<compile_context>
chip_gen: v5e
topology: v5e:2x2
jax: 0.10.0
libtpu: 0.0.40
codegen_flags: <defaults>
</compile_context>

<pallas_src>
import functools

import jax
import jax.numpy as jnp
from jax.experimental import pallas as pl
from jax.experimental.pallas import tpu as pltpu

LANE = 128      # vreg lane width
SUBLANE = 8     # f32 sublane count


def _round_up(x: int, m: int) -> int:
    return (x + m - 1) // m * m


# --------------------------------------------------------------------------
# Fused kernel: x -> [Linear+ReLU]*(L-1) -> Linear
# refs = (x_ref, w0, b0, w1, b1, ..., w_{L-1}, b_{L-1}, o_ref)
# Weights are bf16 (In, Out_pad); biases are f32 (1, Out_pad).  The whole
# activation chain lives in vregs / compiler-managed VMEM (no HBM in between).
# --------------------------------------------------------------------------
def _fused_mlp_kernel(*refs, num_layers: int):
    x_ref = refs[0]
    o_ref = refs[-1]
    h = x_ref[...]                                   # f32 activations
    for i in range(num_layers):
        w = refs[1 + 2 * i][...]                     # bf16 (D_in, D_out_pad)
        b = refs[2 + 2 * i][...]                     # f32  (1, D_out_pad)
        # bf16 x bf16 -> f32 accumulate on the MXU, bias + ReLU in f32 (VPU).
        h = jnp.dot(h.astype(jnp.bfloat16), w,
                    preferred_element_type=jnp.float32) + b
        if i < num_layers - 1:                       # hidden layers get ReLU
            h = jnp.maximum(h, 0.0)
    o_ref[...] = h.astype(o_ref.dtype)


# --------------------------------------------------------------------------
# Parameter init (PyTorch nn.Linear style) and one-time packing
# --------------------------------------------------------------------------
def init_mlp_params(key, input_size, hidden_sizes, output_size):
    """PyTorch-convention params: weight (out, in), bias (out,)."""
    sizes = [input_size] + list(hidden_sizes) + [output_size]
    params = []
    for fan_in, fan_out in zip(sizes[:-1], sizes[1:]):
        key, kw, kb = jax.random.split(key, 3)
        bound = 1.0 / (fan_in ** 0.5)
        w = jax.random.uniform(kw, (fan_out, fan_in), jnp.float32, -bound, bound)
        b = jax.random.uniform(kb, (fan_out,), jnp.float32, -bound, bound)
        params.append((w, b))
    return params


def pack_params(params):
    """Transpose to (In, Out), zero-pad, cast weights to bf16.  Done ONCE.

    * Output dims padded to 128 lanes (lane-dense MXU columns / stores).
    * Input dims padded to 128 EXCEPT the first layer, whose input dim stays
      unpadded so the activation x never needs a feature-dim repack.
    * Weights stored as bf16 (MXU-native), biases stay f32 (added to the f32
      accumulator).
    """
    packed = []
    for li, (w, b) in enumerate(params):
        out_f, in_f = w.shape
        in_p = in_f if li == 0 else _round_up(in_f, LANE)
        out_p = _round_up(out_f, LANE)
        w_t = jnp.zeros((in_p, out_p), jnp.float32).at[:in_f, :out_f].set(w.T)
        b_p = jnp.zeros((1, out_p), jnp.float32).at[0, :out_f].set(b)
        packed.append((w_t.astype(jnp.bfloat16), b_p))
    return packed


# --------------------------------------------------------------------------
# Forward: single pallas_call over a batch grid
# --------------------------------------------------------------------------
def fused_mlp(x, packed_params, *, output_size: int):
    B, in_f = x.shape
    num_layers = len(packed_params)
    out_pad = packed_params[-1][0].shape[1]

    # Batch tiling: multiple of 8 sublanes, capped at 512 rows per grid step.
    # Whenever the batch supports >= 2 tiles, split it so v7x's two TensorCores
    # both get work via dimension_semantics=("parallel",).
    b8 = _round_up(B, SUBLANE)
    if b8 >= 2 * SUBLANE:
        tile_b = min(512, _round_up(pl.cdiv(b8, 2), SUBLANE))
    else:
        tile_b = b8
    b_pad = _round_up(b8, tile_b)

    # Only repack x when batch-row padding is actually required (feature dim is
    # never padded because the first-layer weight keeps an unpadded input dim).
    if b_pad == B:
        x_p = x
    else:
        x_p = jnp.zeros((b_pad, in_f), x.dtype).at[:B, :].set(x)

    # x tile: (tile_b, in_f) — last dim equals the full array dim, so legal even
    # when in_f is not a multiple of 128.
    in_specs = [pl.BlockSpec((tile_b, in_f), lambda i: (i, 0))]
    flat_params = []
    resident = pl.Buffered(1)      # constant blocks -> single-buffer them
    for w, b in packed_params:
        in_specs.append(pl.BlockSpec(w.shape, lambda i: (0, 0),
                                     pipeline_mode=resident))
        in_specs.append(pl.BlockSpec(b.shape, lambda i: (0, 0),
                                     pipeline_mode=resident))
        flat_params.extend([w, b])

    # Explicit VMEM budget: resident params (x1 buffer) + double-buffered x/out
    # tiles + activation-chain headroom, clamped to stay inside v7x's 64 MiB.
    weight_bytes = sum(int(w.size) * w.dtype.itemsize + int(b.size) * b.dtype.itemsize
                       for w, b in packed_params)
    max_width = max([in_f] + [w.shape[1] for w, _ in packed_params])
    io_bytes = 2 * tile_b * in_f * 4 + 2 * tile_b * out_pad * 4
    act_bytes = 4 * tile_b * max_width * 4
    vmem_budget = weight_bytes + io_bytes + act_bytes + (4 << 20)
    vmem_limit = int(min(max(vmem_budget, 16 << 20), 48 << 20))

    # TODO(synk): if weight_bytes ever exceeds ~24 MiB (half of v7x VMEM), switch
    # the largest layers to a tiled K/N grid axis (or pltpu.emit_pipeline)
    # instead of the fully-resident constant-index_map design.
    assert weight_bytes < (24 << 20), "resident-weight design exceeds VMEM budget"

    kernel = functools.partial(_fused_mlp_kernel, num_layers=num_layers)

    out_padded = pl.pallas_call(
        kernel,
        out_shape=jax.ShapeDtypeStruct((b_pad, out_pad), x.dtype),
        grid=(b_pad // tile_b,),
        in_specs=in_specs,
        out_specs=pl.BlockSpec((tile_b, out_pad), lambda i: (i, 0)),
        compiler_params=pltpu.CompilerParams(
            dimension_semantics=("parallel",),   # v7x: batch tiles over 2 TCs
            vmem_limit_bytes=vmem_limit,
        ),
    )(x_p, *flat_params)

    # Lane-dense padded store in-kernel; slice to the true output size here.
    return out_padded[:B, :output_size]


@functools.partial(jax.jit, static_argnames=("output_size",))
def mlp_forward(x, packed_params, output_size):
    return fused_mlp(x, packed_params, output_size=output_size)


if __name__ == "__main__":
    # Small shapes consistent with the module: x is (batch, input_size).
    batch = 8
    input_size = 32
    hidden_sizes = [64, 32]
    output_size = 16

    key = jax.random.PRNGKey(0)
    key, kx = jax.random.split(key)
    x = jax.random.normal(kx, (batch, input_size), jnp.float32)

    params = init_mlp_params(key, input_size, hidden_sizes, output_size)
    packed = pack_params(params)   # one-time transpose + padding + bf16 cast

    out = mlp_forward(x, packed, output_size)
    out = jax.block_until_ready(out)

    # Plain-JAX f32 reference of the same MLP (PyTorch-convention weights).
    ref_f32 = x
    for i, (w, b) in enumerate(params):
        ref_f32 = ref_f32 @ w.T + b
        if i < len(params) - 1:
            ref_f32 = jnp.maximum(ref_f32, 0.0)

    # Reference emulating the kernel's numerics (bf16 MXU inputs, f32 accum).
    ref_bf16 = x
    for i, (w, b) in enumerate(params):
        ref_bf16 = jnp.dot(ref_bf16.astype(jnp.bfloat16),
                           w.T.astype(jnp.bfloat16),
                           preferred_element_type=jnp.float32) + b
        if i < len(params) - 1:
            ref_bf16 = jnp.maximum(ref_bf16, 0.0)

    assert out.shape == (batch, output_size)
    # Tight check vs. the bf16-input reference; loose sanity check vs. pure f32
    # (bf16 operands shift results by ~1e-3 relative, expected).
    assert jnp.allclose(out, ref_bf16, atol=2e-3, rtol=2e-3), (
        float(jnp.max(jnp.abs(out - ref_bf16))))
    assert jnp.allclose(out, ref_f32, atol=5e-2, rtol=5e-2), (
        float(jnp.max(jnp.abs(out - ref_f32))))

    print("KERNEL_OK")
</pallas_src>

<mosaic_0001>
module attributes {stable_mosaic.version = 11 : i64} {
  func.func @_fused_mlp_kernel(%arg0: i32, %arg1: memref<8x32xf32, #tpu.memory_space<vmem>>, %arg2: memref<32x128xbf16, #tpu.memory_space<vmem>>, %arg3: memref<1x128xf32, #tpu.memory_space<vmem>>, %arg4: memref<128x128xbf16, #tpu.memory_space<vmem>>, %arg5: memref<1x128xf32, #tpu.memory_space<vmem>>, %arg6: memref<128x128xbf16, #tpu.memory_space<vmem>>, %arg7: memref<1x128xf32, #tpu.memory_space<vmem>>, %arg8: memref<8x128xf32, #tpu.memory_space<vmem>>) attributes {dimension_semantics = [#tpu.dimension_semantics<parallel>], iteration_bounds = array<i64: 1>, scalar_prefetch = 0 : i64, scratch_operands = 0 : i64, tpu.core_type = #tpu.core_type<tc>, window_params = [{transform_indices = @transform_0, window_bounds = array<i64: 8, 32>}, {pipeline_mode = #tpu.pipeline_mode<synchronous>, transform_indices = @transform_1, window_bounds = array<i64: 32, 128>}, {pipeline_mode = #tpu.pipeline_mode<synchronous>, transform_indices = @transform_2, window_bounds = array<i64: 1, 128>}, {pipeline_mode = #tpu.pipeline_mode<synchronous>, transform_indices = @transform_3, window_bounds = array<i64: 128, 128>}, {pipeline_mode = #tpu.pipeline_mode<synchronous>, transform_indices = @transform_4, window_bounds = array<i64: 1, 128>}, {pipeline_mode = #tpu.pipeline_mode<synchronous>, transform_indices = @transform_5, window_bounds = array<i64: 128, 128>}, {pipeline_mode = #tpu.pipeline_mode<synchronous>, transform_indices = @transform_6, window_bounds = array<i64: 1, 128>}, {transform_indices = @transform_7, window_bounds = array<i64: 8, 128>}]} {
    %c0 = arith.constant 0 : index
    %c0_0 = arith.constant 0 : index
    %0 = vector.load %arg1[%c0, %c0_0] : memref<8x32xf32, #tpu.memory_space<vmem>>, vector<8x32xf32>
    %c0_1 = arith.constant 0 : index
    %c0_2 = arith.constant 0 : index
    %1 = vector.load %arg2[%c0_1, %c0_2] : memref<32x128xbf16, #tpu.memory_space<vmem>>, vector<32x128xbf16>
    %c0_3 = arith.constant 0 : index
    %c0_4 = arith.constant 0 : index
    %2 = vector.load %arg3[%c0_3, %c0_4] : memref<1x128xf32, #tpu.memory_space<vmem>>, vector<1x128xf32>
    %3 = arith.truncf %0 : vector<8x32xf32> to vector<8x32xbf16>
    %cst = arith.constant dense<0.000000e+00> : vector<8x128xf32>
    %4 = tpu.matmul %3, %1, %cst {dimension_numbers = #tpu.dot_dimension_numbers<[1], [0], [0], [1], [0, 0, 1, 1], [], []>} : vector<8x32xbf16>, vector<32x128xbf16>, vector<8x128xf32> -> vector<8x128xf32>
    %5 = vector.broadcast %2 : vector<1x128xf32> to vector<8x128xf32>
    %6 = arith.addf %4, %5 : vector<8x128xf32>
    %cst_5 = arith.constant 0.000000e+00 : f32
    %7 = vector.broadcast %cst_5 : f32 to vector<8x128xf32>
    %8 = arith.maximumf %6, %7 : vector<8x128xf32>
    %c0_6 = arith.constant 0 : index
    %c0_7 = arith.constant 0 : index
    %9 = vector.load %arg4[%c0_6, %c0_7] : memref<128x128xbf16, #tpu.memory_space<vmem>>, vector<128x128xbf16>
    %c0_8 = arith.constant 0 : index
    %c0_9 = arith.constant 0 : index
    %10 = vector.load %arg5[%c0_8, %c0_9] : memref<1x128xf32, #tpu.memory_space<vmem>>, vector<1x128xf32>
    %11 = arith.truncf %8 : vector<8x128xf32> to vector<8x128xbf16>
    %cst_10 = arith.constant dense<0.000000e+00> : vector<8x128xf32>
    %12 = tpu.matmul %11, %9, %cst_10 {dimension_numbers = #tpu.dot_dimension_numbers<[1], [0], [0], [1], [0, 0, 1, 1], [], []>} : vector<8x128xbf16>, vector<128x128xbf16>, vector<8x128xf32> -> vector<8x128xf32>
    %13 = vector.broadcast %10 : vector<1x128xf32> to vector<8x128xf32>
    %14 = arith.addf %12, %13 : vector<8x128xf32>
    %cst_11 = arith.constant 0.000000e+00 : f32
    %15 = vector.broadcast %cst_11 : f32 to vector<8x128xf32>
    %16 = arith.maximumf %14, %15 : vector<8x128xf32>
    %c0_12 = arith.constant 0 : index
    %c0_13 = arith.constant 0 : index
    %17 = vector.load %arg6[%c0_12, %c0_13] : memref<128x128xbf16, #tpu.memory_space<vmem>>, vector<128x128xbf16>
    %c0_14 = arith.constant 0 : index
    %c0_15 = arith.constant 0 : index
    %18 = vector.load %arg7[%c0_14, %c0_15] : memref<1x128xf32, #tpu.memory_space<vmem>>, vector<1x128xf32>
    %19 = arith.truncf %16 : vector<8x128xf32> to vector<8x128xbf16>
    %cst_16 = arith.constant dense<0.000000e+00> : vector<8x128xf32>
    %20 = tpu.matmul %19, %17, %cst_16 {dimension_numbers = #tpu.dot_dimension_numbers<[1], [0], [0], [1], [0, 0, 1, 1], [], []>} : vector<8x128xbf16>, vector<128x128xbf16>, vector<8x128xf32> -> vector<8x128xf32>
    %21 = vector.broadcast %18 : vector<1x128xf32> to vector<8x128xf32>
    %22 = arith.addf %20, %21 : vector<8x128xf32>
    %c0_17 = arith.constant 0 : index
    %c0_18 = arith.constant 0 : index
    %23 = vector.load %arg8[%c0_17, %c0_18] : memref<8x128xf32, #tpu.memory_space<vmem>>, vector<8x128xf32>
    tpu.vector_store %arg8[%c0_17, %c0_18], %22 {strides = array<i32>} : memref<8x128xf32, #tpu.memory_space<vmem>>, vector<8x128xf32>,
    return
  }
  func.func @transform_0(%arg0: i32) -> (i32, i32) {
    %c0_i32 = arith.constant 0 : i32
    %c0_i32_0 = arith.constant 0 : i32
    return %arg0, %c0_i32 : i32, i32
  }
  func.func @transform_1(%arg0: i32) -> (i32, i32) {
    %c0_i32 = arith.constant 0 : i32
    %c0_i32_0 = arith.constant 0 : i32
    %c0_i32_1 = arith.constant 0 : i32
    return %c0_i32, %c0_i32_0 : i32, i32
  }
  func.func @transform_2(%arg0: i32) -> (i32, i32) {
    %c0_i32 = arith.constant 0 : i32
    %c0_i32_0 = arith.constant 0 : i32
    %c0_i32_1 = arith.constant 0 : i32
    return %c0_i32, %c0_i32_0 : i32, i32
  }
  func.func @transform_3(%arg0: i32) -> (i32, i32) {
    %c0_i32 = arith.constant 0 : i32
    %c0_i32_0 = arith.constant 0 : i32
    %c0_i32_1 = arith.constant 0 : i32
    return %c0_i32, %c0_i32_0 : i32, i32
  }
  func.func @transform_4(%arg0: i32) -> (i32, i32) {
    %c0_i32 = arith.constant 0 : i32
    %c0_i32_0 = arith.constant 0 : i32
    %c0_i32_1 = arith.constant 0 : i32
    return %c0_i32, %c0_i32_0 : i32, i32
  }
  func.func @transform_5(%arg0: i32) -> (i32, i32) {
    %c0_i32 = arith.constant 0 : i32
    %c0_i32_0 = arith.constant 0 : i32
    %c0_i32_1 = arith.constant 0 : i32
    return %c0_i32, %c0_i32_0 : i32, i32
  }
  func.func @transform_6(%arg0: i32) -> (i32, i32) {
    %c0_i32 = arith.constant 0 : i32
    %c0_i32_0 = arith.constant 0 : i32
    %c0_i32_1 = arith.constant 0 : i32
    return %c0_i32, %c0_i32_0 : i32, i32
  }
  func.func @transform_7(%arg0: i32) -> (i32, i32) {
    %c0_i32 = arith.constant 0 : i32
    %c0_i32_0 = arith.constant 0 : i32
    return %arg0, %c0_i32 : i32, i32
  }
}

</mosaic_0001>

<llo_original>
// kernel: mlp_forward.1
$region0: #{mlp_forward.1}
  #allocation0 [shape = 'u32[]', space=smem, size = 0x4, offset = 0x4, fixed_abs, tag = 'smem constant byte address 0x4 - core index']
  #allocation1 [shape = 'u32[72,128]{1,0:T(1,128)}', space=vmem, size = 0x9000, scoped, tag = 'internal scratch']
  %s0 = inlined_call_operand.hbm [shape: f32[8,32], index: 0, kind: input, shape index: {}]
  %s1 = inlined_call_operand.hbm [shape: bf16[32,128], index: 1, kind: input, shape index: {}]
  %s2 = inlined_call_operand.vmem [shape: f32[1,128], index: 2, kind: input, shape index: {}]
  %s3 = inlined_call_operand.hbm [shape: bf16[128,128], index: 3, kind: input, shape index: {}]
  %s4 = inlined_call_operand.vmem [shape: f32[1,128], index: 4, kind: input, shape index: {}]
  %s5 = inlined_call_operand.hbm [shape: bf16[128,128], index: 5, kind: input, shape index: {}]
  %s6 = inlined_call_operand.vmem [shape: f32[1,128], index: 6, kind: input, shape index: {}]
  %s7 = inlined_call_operand.hbm [shape: f32[8,128], index: 7, kind: output, shape index: {}]
  %s8 = sld [smem:[#allocation0]]
  $region54: #{mlp_forward.1} parent=0
    _
  %s10 = ssub.s32 1, %s8
  %s11 = scalar_select 0, %s10, %s8
  $region1: #{mlp_forward.1} parent=0
    #allocation2 [shape = 'u8[4096]{0}', space=vmem, size = 0x1000, scoped, tag = 'input window, operand 0, single buffered']
    #allocation3 [shape = 's32[1]{0}', space=sflag, size = 0x4, scoped, tag = 'scoped memory for mlp_forward.1']
    #allocation4 [shape = 's32[1]{0}', space=sflag, size = 0x4, scoped, tag = 'scoped memory for mlp_forward.1']
    #allocation5 [shape = 'u8[8192]{0}', space=vmem, size = 0x2000, scoped, tag = 'input window, operand 1, single buffered']
    #allocation6 [shape = 's32[1]{0}', space=sflag, size = 0x4, scoped, tag = 'scoped memory for mlp_forward.1']
    #allocation7 [shape = 'u8[32768]{0}', space=vmem, size = 0x8000, scoped, tag = 'input window, operand 3, single buffered']
    #allocation8 [shape = 'u8[32768]{0}', space=vmem, size = 0x8000, scoped, tag = 'input window, operand 5, single buffered']
    #allocation9 [shape = 's32[1]{0}', space=sflag, size = 0x4, scoped, tag = 'scoped memory for mlp_forward.1']
    #allocation10 [shape = 'u8[4096]{0}', space=vmem, size = 0x1000, scoped, tag = 'output window, operand 0, single buffered']
    %12 = vsyncpa [#allocation3], 0
    %13 = vsyncpa [#allocation6], 0
    %14 = vsyncpa [#allocation9], 0
    %15 = vsyncpa [#allocation4], 0
    // Predicated region
    $region2: #{mlp_forward.1} parent=1 // pred_check
      _
    $region3: #{mlp_forward.1} parent=1 // pred_check_branch
      %17 = sbr.rel (0) target = $region5
    $region4: #{mlp_forward.1} parent=1 // pred_region
      %19 = vsyncadd [#allocation3], 0
      %s21 = sshll.u32 %s0, 4
      %s22 = int_to_ptr.hbm [resolvable:$true] %s21
      %s23 = sshll.u32 [#allocation2], 4
      %s24 = int_to_ptr.vmem [resolvable:$true] %s23
      %26 = dma.hbm_to_vmem [thread:$0]  %s22, 128, %s24, [#allocation3]
    $region5: #{mlp_forward.1} parent=1 // pred_fallthru
      _
    // Predicated region
    $region6: #{mlp_forward.1} parent=1 // pred_check
      _
    $region7: #{mlp_forward.1} parent=1 // pred_check_branch
      %28 = sbr.rel (0) target = $region9
    $region8: #{mlp_forward.1} parent=1 // pred_region
      %30 = vsyncadd [#allocation6], 0
      %s31 = sshll.u32 %s1, 4
      %s32 = int_to_ptr.hbm [resolvable:$true] %s31
      %s33 = sshll.u32 [#allocation5], 4
      %s34 = int_to_ptr.vmem [resolvable:$true] %s33
      %39 = dma.hbm_to_vmem [thread:$0]  %s32, 256, %s34, [#allocation6], 64, 64, 4
    $region9: #{mlp_forward.1} parent=1 // pred_fallthru
      _
    // Predicated region
    $region10: #{mlp_forward.1} parent=1 // pred_check
      _
    $region11: #{mlp_forward.1} parent=1 // pred_check_branch
      %41 = sbr.rel (0) target = $region13
    $region12: #{mlp_forward.1} parent=1 // pred_region
      _
    $region13: #{mlp_forward.1} parent=1 // pred_fallthru
      _
    // Predicated region
    $region14: #{mlp_forward.1} parent=1 // pred_check
      _
    $region15: #{mlp_forward.1} parent=1 // pred_check_branch
      %43 = sbr.rel (0) target = $region17
    $region16: #{mlp_forward.1} parent=1 // pred_region
      %45 = vsyncadd [#allocation6], 0
      %s46 = sshll.u32 %s3, 4
      %s47 = int_to_ptr.hbm [resolvable:$true] %s46
      %s48 = sshll.u32 [#allocation7], 4
      %s49 = int_to_ptr.vmem [resolvable:$true] %s48
      %54 = dma.hbm_to_vmem [thread:$0]  %s47, 1024, %s49, [#allocation6], 64, 64, 4
    $region17: #{mlp_forward.1} parent=1 // pred_fallthru
      _
    // Predicated region
    $region18: #{mlp_forward.1} parent=1 // pred_check
      _
    $region19: #{mlp_forward.1} parent=1 // pred_check_branch
      %56 = sbr.rel (0) target = $region21
    $region20: #{mlp_forward.1} parent=1 // pred_region
      _
    $region21: #{mlp_forward.1} parent=1 // pred_fallthru
      _
    // Predicated region
    $region22: #{mlp_forward.1} parent=1 // pred_check
      _
    $region23: #{mlp_forward.1} parent=1 // pred_check_branch
      %58 = sbr.rel (0) target = $region25
    $region24: #{mlp_forward.1} parent=1 // pred_region
      %60 = vsyncadd [#allocation9], 0
      %s61 = sshll.u32 %s5, 4
      %s62 = int_to_ptr.hbm [resolvable:$true] %s61
      %s63 = sshll.u32 [#allocation8], 4
      %s64 = int_to_ptr.vmem [resolvable:$true] %s63
      %69 = dma.hbm_to_vmem [thread:$0]  %s62, 1024, %s64, [#allocation9], 64, 64, 4
    $region25: #{mlp_forward.1} parent=1 // pred_fallthru
      _
    // Predicated region
    $region26: #{mlp_forward.1} parent=1 // pred_check
      _
    $region27: #{mlp_forward.1} parent=1 // pred_check_branch
      %71 = sbr.rel (0) target = $region29
    $region28: #{mlp_forward.1} parent=1 // pred_region
      _
    $region29: #{mlp_forward.1} parent=1 // pred_fallthru
      _
    // Predicated region
    $region30: #{mlp_forward.1} parent=1 // pred_check
      _
    $region31: #{mlp_forward.1} parent=1 // pred_check_branch
      %73 = sbr.rel (0) target = $region33
    $region32: #{mlp_forward.1} parent=1 // pred_region
      %75 = dma.done [#allocation3], 128
    $region33: #{mlp_forward.1} parent=1 // pred_fallthru
      _
    // Predicated region
    $region34: #{mlp_forward.1} parent=1 // pred_check
      _
    $region35: #{mlp_forward.1} parent=1 // pred_check_branch
      %77 = sbr.rel (0) target = $region37
    $region36: #{mlp_forward.1} parent=1 // pred_region
      %79 = dma.done [#allocation6], 256
    $region37: #{mlp_forward.1} parent=1 // pred_fallthru
      _
    // Predicated region
    $region38: #{mlp_forward.1} parent=1 // pred_check
      _
    $region39: #{mlp_forward.1} parent=1 // pred_check_branch
      %81 = sbr.rel (0) target = $region41
    $region40: #{mlp_forward.1} parent=1 // pred_region
      %83 = dma.done [#allocation6], 1024
    $region41: #{mlp_forward.1} parent=1 // pred_fallthru
      _
    // Predicated region
    $region42: #{mlp_forward.1} parent=1 // pred_check
      _
    $region43: #{mlp_forward.1} parent=1 // pred_check_branch
      %85 = sbr.rel (0) target = $region45
    $region44: #{mlp_forward.1} parent=1 // pred_region
      %87 = dma.done [#allocation9], 1024
    $region45: #{mlp_forward.1} parent=1 // pred_fallthru
      _
    %v89 = vld [vmem:[#allocation2] sm:$0xff]
    %v90 = vld [vmem:[#allocation5] sm:$0xf]
    %v91 = vld [vmem:[#allocation5 + $0x4] sm:$0xf]
    %v92 = vld [vmem:[#allocation5 + $0x8] sm:$0xf]
    %v93 = vld [vmem:[#allocation5 + $0xc] sm:$0xf]
    %v94 = vld [vmem:[%s2] sm:$0x1]
    %v95 = vpack.c.bf16 %v89, %v89
    %v97 = vperm.slane %v94, 0
    %v103 = vunpack.c.l.b16 %v90
    %v104 = vunpack.c.l.b16 %v91
    %v105 = vunpack.c.l.b16 %v92
    %v106 = vunpack.c.l.b16 %v93
    %v107 = vpack.c.b16 %v104, %v103
    %v108 = vpack.c.b16 %v106, %v105
    %vm111 = vcmask 261120
    %v113 = vsel %vm111, %v95, 0
    %115 = vmatpush.bf16.msra.mxu0 0
    %116 = vmatpush.bf16.msra.mxu0 0
    %117 = vmatpush.bf16.msra.mxu0 0
    %118 = vmatpush.bf16.msra.mxu0 0
    %119 = vmatpush.bf16.msra.mxu0 0
    %120 = vmatpush.bf16.msra.mxu0 0
    %121 = vmatpush.bf16.msra.mxu0 %v108
    %122 = vmatpush.bf16.msra.mxu0 %v107
    %123 = vmatmul.bf16.gmra.mxu0 %v113
    %v124 = vpop.f32.mrf.mxu0
    %v125 = vadd.f32 %v97, %v124
    %v126 = vpop.f32.mrf.mxu0
    %127 = vdwg.mxu0
    %v128 = vmax.f32 %v125, 0.0
    %v129 = vld [vmem:[#allocation7] sm:$0xf]
    %v130 = vld [vmem:[#allocation7 + $0x4] sm:$0xf]
    %v131 = vld [vmem:[#allocation7 + $0x8] sm:$0xf]
    %v132 = vld [vmem:[#allocation7 + $0xc] sm:$0xf]
    %v133 = vld [vmem:[#allocation7 + $0x10] sm:$0xf]
    %v134 = vld [vmem:[#allocation7 + $0x14] sm:$0xf]
    %v135 = vld [vmem:[#allocation7 + $0x18] sm:$0xf]
    %v136 = vld [vmem:[#allocation7 + $0x1c] sm:$0xf]
    %v137 = vld [vmem:[#allocation7 + $0x20] sm:$0xf]
    %v138 = vld [vmem:[#allocation7 + $0x24] sm:$0xf]
    %v139 = vld [vmem:[#allocation7 + $0x28] sm:$0xf]
    %v140 = vld [vmem:[#allocation7 + $0x2c] sm:$0xf]
    %v141 = vld [vmem:[#allocation7 + $0x30] sm:$0xf]
    %v142 = vld [vmem:[#allocation7 + $0x34] sm:$0xf]
    %v143 = vld [vmem:[#allocation7 + $0x38] sm:$0xf]
    %v144 = vld [vmem:[#allocation7 + $0x3c] sm:$0xf]
    %v145 = vld [vmem:[%s4] sm:$0x1]
    %v146 = vpack.c.bf16 %v128, %v128
    %v148 = vperm.slane %v145, 0
    %v166 = vunpack.c.l.b16 %v129
    %v167 = vunpack.c.l.b16 %v130
    %v168 = vunpack.c.l.b16 %v131
    %v169 = vunpack.c.l.b16 %v132
    %v170 = vunpack.c.l.b16 %v133
    %v171 = vunpack.c.l.b16 %v134
    %v172 = vunpack.c.l.b16 %v135
    %v173 = vunpack.c.l.b16 %v136
    %v174 = vunpack.c.l.b16 %v137
    %v175 = vunpack.c.l.b16 %v138
    %v176 = vunpack.c.l.b16 %v139
    %v177 = vunpack.c.l.b16 %v140
    %v178 = vunpack.c.l.b16 %v141
    %v179 = vunpack.c.l.b16 %v142
    %v180 = vunpack.c.l.b16 %v143
    %v181 = vunpack.c.l.b16 %v144
    %v182 = vpack.c.b16 %v167, %v166
    %v183 = vpack.c.b16 %v169, %v168
    %v184 = vpack.c.b16 %v171, %v170
    %v185 = vpack.c.b16 %v173, %v172
    %v186 = vpack.c.b16 %v175, %v174
    %v187 = vpack.c.b16 %v177, %v176
    %v188 = vpack.c.b16 %v179, %v178
    %v189 = vpack.c.b16 %v181, %v180
    %198 = vmatpush.bf16.msra.mxu0 %v189
    %199 = vmatpush.bf16.msra.mxu0 %v188
    %200 = vmatpush.bf16.msra.mxu0 %v187
    %201 = vmatpush.bf16.msra.mxu0 %v186
    %202 = vmatpush.bf16.msra.mxu0 %v185
    %203 = vmatpush.bf16.msra.mxu0 %v184
    %204 = vmatpush.bf16.msra.mxu0 %v183
    %205 = vmatpush.bf16.msra.mxu0 %v182
    %206 = vmatmul.bf16.gmra.mxu0 %v146
    %v207 = vpop.f32.mrf.mxu0
    %v208 = vadd.f32 %v148, %v207
    %v209 = vpop.f32.mrf.mxu0
    %210 = vdwg.mxu0
    %v211 = vmax.f32 %v208, 0.0
    %v212 = vld [vmem:[#allocation8] sm:$0xf]
    %v213 = vld [vmem:[#allocation8 + $0x4] sm:$0xf]
    %v214 = vld [vmem:[#allocation8 + $0x8] sm:$0xf]
    %v215 = vld [vmem:[#allocation8 + $0xc] sm:$0xf]
    %v216 = vld [vmem:[#allocation8 + $0x10] sm:$0xf]
    %v217 = vld [vmem:[#allocation8 + $0x14] sm:$0xf]
    %v218 = vld [vmem:[#allocation8 + $0x18] sm:$0xf]
    %v219 = vld [vmem:[#allocation8 + $0x1c] sm:$0xf]
    %v220 = vld [vmem:[#allocation8 + $0x20] sm:$0xf]
    %v221 = vld [vmem:[#allocation8 + $0x24] sm:$0xf]
    %v222 = vld [vmem:[#allocation8 + $0x28] sm:$0xf]
    %v223 = vld [vmem:[#allocation8 + $0x2c] sm:$0xf]
    %v224 = vld [vmem:[#allocation8 + $0x30] sm:$0xf]
    %v225 = vld [vmem:[#allocation8 + $0x34] sm:$0xf]
    %v226 = vld [vmem:[#allocation8 + $0x38] sm:$0xf]
    %v227 = vld [vmem:[#allocation8 + $0x3c] sm:$0xf]
    %v228 = vld [vmem:[%s6] sm:$0x1]
    %v229 = vpack.c.bf16 %v211, %v211
    %v231 = vperm.slane %v228, 0
    %v249 = vunpack.c.l.b16 %v212
    %v250 = vunpack.c.l.b16 %v213
    %v251 = vunpack.c.l.b16 %v214
    %v252 = vunpack.c.l.b16 %v215
    %v253 = vunpack.c.l.b16 %v216
    %v254 = vunpack.c.l.b16 %v217
    %v255 = vunpack.c.l.b16 %v218
    %v256 = vunpack.c.l.b16 %v219
    %v257 = vunpack.c.l.b16 %v220
    %v258 = vunpack.c.l.b16 %v221
    %v259 = vunpack.c.l.b16 %v222
    %v260 = vunpack.c.l.b16 %v223
    %v261 = vunpack.c.l.b16 %v224
    %v262 = vunpack.c.l.b16 %v225
    %v263 = vunpack.c.l.b16 %v226
    %v264 = vunpack.c.l.b16 %v227
    %v265 = vpack.c.b16 %v250, %v249
    %v266 = vpack.c.b16 %v252, %v251
    %v267 = vpack.c.b16 %v254, %v253
    %v268 = vpack.c.b16 %v256, %v255
    %v269 = vpack.c.b16 %v258, %v257
    %v270 = vpack.c.b16 %v260, %v259
    %v271 = vpack.c.b16 %v262, %v261
    %v272 = vpack.c.b16 %v264, %v263
    %281 = vmatpush.bf16.msra.mxu0 %v272
    %282 = vmatpush.bf16.msra.mxu0 %v271
    %283 = vmatpush.bf16.msra.mxu0 %v270
    %284 = vmatpush.bf16.msra.mxu0 %v269
    %285 = vmatpush.bf16.msra.mxu0 %v268
    %286 = vmatpush.bf16.msra.mxu0 %v267
    %287 = vmatpush.bf16.msra.mxu0 %v266
    %288 = vmatpush.bf16.msra.mxu0 %v265
    %289 = vmatmul.bf16.gmra.mxu0 %v229
    %v290 = vpop.f32.mrf.mxu0
    %v291 = vadd.f32 %v231, %v290
    %v292 = vpop.f32.mrf.mxu0
    %293 = vdwg.mxu0
    %294 = vst [vmem:[#allocation10] sm:$0xff] %v291
    // Predicated region
    $region46: #{mlp_forward.1} parent=1 // pred_check
      _
    $region47: #{mlp_forward.1} parent=1 // pred_check_branch
      %296 = sbr.rel (0) target = $region49
    $region48: #{mlp_forward.1} parent=1 // pred_region
      %298 = vsyncadd [#allocation4], 0
      %s300 = sshll.u32 [#allocation10], 4
      %s301 = int_to_ptr.vmem [resolvable:$true] %s300
      %s302 = sshll.u32 %s7, 4
      %s303 = int_to_ptr.hbm [resolvable:$true] %s302
      %305 = dma.vmem_to_hbm [thread:$0]  %s301, 128, %s303, [#allocation4]
    $region49: #{mlp_forward.1} parent=1 // pred_fallthru
      _
    // Predicated region
    $region50: #{mlp_forward.1} parent=1 // pred_check
      _
    $region51: #{mlp_forward.1} parent=1 // pred_check_branch
      %307 = sbr.rel (0) target = $region53
    $region52: #{mlp_forward.1} parent=1 // pred_region
      %309 = dma.done [#allocation4], 128
    $region53: #{mlp_forward.1} parent=1 // pred_fallthru
      _
    %310 = vsyncpa [#allocation3], 1
    %311 = vsyncpa [#allocation6], 1
    %312 = vsyncpa [#allocation9], 1
    %313 = vsyncpa [#allocation4], 1

</llo_original>
